<compile_context>
chip_gen: v5e
topology: v5e:2x2
jax: 0.10.0
libtpu: 0.0.40
codegen_flags: <defaults>
</compile_context>

<pallas_src>
import functools

import jax
import jax.numpy as jnp
from jax.experimental import pallas as pl
from jax.experimental.pallas import tpu as pltpu

INPUT_SIZE = 102
LAYER_SIZE = 20
N_LAYERS = 3
N_CLASSES = 9


def _round_up(x, m):
    return ((x + m - 1) // m) * m


def _use_bf16_activations():
    """bf16 VPU/EUP exists on v6e/v7x; keep f32 activations elsewhere."""
    try:
        kind = jax.devices()[0].device_kind.lower()
    except Exception:
        return False
    return ("v6" in kind) or ("v7" in kind)


def mlp_ce_kernel(x_ref, lbl_ref,
                  w0_ref, b0_ref, w1_ref, b1_ref, w2_ref, b2_ref,
                  wf_ref, bf_ref,
                  out_ref, *, tb, n_valid, n_padded, bf16_act):
    i = pl.program_id(0)

    # bf16 MXU operands, activations in act_t (bf16 on v6e/v7x, f32 on v5e).
    act_t = jnp.bfloat16 if bf16_act else jnp.float32
    xb = x_ref[...]                                               # (tb, 102) bf16

    h = jax.nn.sigmoid(
        jnp.dot(xb, w0_ref[...], preferred_element_type=act_t) + b0_ref[...])
    h = jax.nn.sigmoid(
        jnp.dot(h.astype(jnp.bfloat16), w1_ref[...],
                preferred_element_type=act_t) + b1_ref[...])
    h = jax.nn.sigmoid(
        jnp.dot(h.astype(jnp.bfloat16), w2_ref[...],
                preferred_element_type=act_t) + b2_ref[...])
    # Final logits kept in f32 for stable cross entropy.
    logits = (jnp.dot(h.astype(jnp.bfloat16), wf_ref[...],
                      preferred_element_type=jnp.float32)
              + bf_ref[...])                                      # (tb, 9) f32

    # Numerically stable CE; labels are int32 (tb, 1) -> iota compare, no
    # one-hot in HBM.
    m = jnp.max(logits, axis=-1, keepdims=True)
    lse = jnp.log(jnp.sum(jnp.exp(logits - m), axis=-1, keepdims=True)) + m
    cls = jax.lax.broadcasted_iota(jnp.int32, logits.shape, 1)
    tgt = jnp.sum(jnp.where(cls == lbl_ref[...], logits, 0.0),
                  axis=-1, keepdims=True)
    per_ex = lse - tgt                                            # (tb, 1) f32

    if n_padded != n_valid:
        # Zero the rows that only exist because of batch padding.
        row = i * tb + jax.lax.broadcasted_iota(jnp.int32, per_ex.shape, 0)
        per_ex = jnp.where(row < n_valid, per_ex, 0.0)

    # Disjoint per-tile output block (no shared accumulator) -> "parallel"
    # batch axis is safe; wrapper reduces.
    out_ref[...] = per_ex


def pavia_mlp_ce_loss(x, labels, params, *, tb=4096, bf16_act=None):
    """x: (B, 102) float, labels: (B,) int. Returns scalar mean CE loss."""
    b = x.shape[0]
    if bf16_act is None:
        bf16_act = _use_bf16_activations()
    act_t = jnp.bfloat16 if bf16_act else jnp.float32

    # bf16 sublane tile is 16 rows -> round batch/tile to multiples of 16.
    tb = max(16, min(_round_up(tb, 16), _round_up(b, 16)))
    b_pad = _round_up(b, tb)
    n_tiles = b_pad // tb

    # Single pass over x: bf16 cast (+ one batch pad only if needed).
    # Feature dim stays at 102 (full-last-dim block, no 102->128 pad copy).
    x = x.reshape(b, INPUT_SIZE).astype(jnp.bfloat16)
    labels = labels.astype(jnp.int32).reshape(b, 1)
    if b_pad != b:
        x = jnp.pad(x, ((0, b_pad - b), (0, 0)))
        labels = jnp.pad(labels, ((0, b_pad - b), (0, 0)))

    (w0, b0), (w1, b1), (w2, b2), (wf, bf) = params
    w0b = w0.astype(jnp.bfloat16)          # (102, 20) — no row padding needed
    w1b = w1.astype(jnp.bfloat16)
    w2b = w2.astype(jnp.bfloat16)
    wfb = wf.astype(jnp.bfloat16)
    b0r = b0.reshape(1, -1).astype(act_t)
    b1r = b1.reshape(1, -1).astype(act_t)
    b2r = b2.reshape(1, -1).astype(act_t)
    bfr = bf.reshape(1, -1).astype(jnp.float32)

    args = (x, labels, w0b, b0r, w1b, b1r, w2b, b2r, wfb, bfr)

    def resident(arr):
        # Whole array as one block with a constant index_map -> DMA'd once,
        # VMEM-resident for the entire grid.
        return pl.BlockSpec(arr.shape, lambda i: (0, 0))

    in_specs = [
        pl.BlockSpec((tb, INPUT_SIZE), lambda i: (i, 0)),   # x tiles (bf16)
        pl.BlockSpec((tb, 1), lambda i: (i, 0)),            # label tiles
        resident(w0b), resident(b0r), resident(w1b), resident(b1r),
        resident(w2b), resident(b2r), resident(wfb), resident(bfr),
    ]

    flops = 2 * b * (INPUT_SIZE * LAYER_SIZE
                     + 2 * LAYER_SIZE * LAYER_SIZE
                     + LAYER_SIZE * N_CLASSES)
    transcendentals = b * (N_LAYERS * LAYER_SIZE + N_CLASSES)
    bytes_accessed = (x.size * x.dtype.itemsize + labels.size * 4
                      + sum(int(a.size) * a.dtype.itemsize for a in args[2:])
                      + b_pad * 4)

    kernel = functools.partial(mlp_ce_kernel, tb=tb, n_valid=b,
                               n_padded=b_pad, bf16_act=bf16_act)
    per_ex = pl.pallas_call(
        kernel,
        out_shape=jax.ShapeDtypeStruct((b_pad, 1), jnp.float32),
        grid_spec=pltpu.PrefetchScalarGridSpec(
            num_scalar_prefetch=0,
            grid=(n_tiles,),
            in_specs=in_specs,
            out_specs=pl.BlockSpec((tb, 1), lambda i: (i, 0)),
        ),
        compiler_params=pltpu.CompilerParams(
            dimension_semantics=("parallel",)),   # disjoint outputs -> megacore OK
        cost_estimate=pl.CostEstimate(
            flops=flops, transcendentals=transcendentals,
            bytes_accessed=bytes_accessed),
    )(*args)
    # Padded rows were zeroed in-kernel, so a plain sum / B is the mean CE.
    return jnp.sum(per_ex) / jnp.float32(b)


def init_params(key):
    """Deterministic parameter init matching the module's __init__ shapes."""
    params = []
    in_size = INPUT_SIZE
    keys = jax.random.split(key, N_LAYERS + 1)
    for i in range(N_LAYERS):
        w = jax.random.normal(keys[i], (in_size, LAYER_SIZE), dtype=jnp.float32)
        b = jnp.zeros((LAYER_SIZE,), dtype=jnp.float32)
        params.append((w, b))
        in_size = LAYER_SIZE
    wf = jax.random.normal(keys[-1], (in_size, N_CLASSES), dtype=jnp.float32)
    bf = jnp.zeros((N_CLASSES,), dtype=jnp.float32)
    params.append((wf, bf))
    return params


if __name__ == "__main__":
    key = jax.random.PRNGKey(0)
    k_param, k_x, k_y = jax.random.split(key, 3)

    # TODO(synk): the module's loss.sample() data-loader is replaced by a
    # deterministic synthetic (inp, out) pair built in-script.
    batch = 50                      # non-multiple of tile -> exercises masking
    params = init_params(k_param)
    x = jax.random.normal(k_x, (batch, INPUT_SIZE), dtype=jnp.float32)
    labels = jax.random.randint(k_y, (batch,), 0, N_CLASSES, dtype=jnp.int32)

    # Small tile here so the multi-tile grid + partial-output path is
    # exercised; production default is tb=4096.
    loss = pavia_mlp_ce_loss(x, labels, params, tb=16)
    jax.block_until_ready(loss)
    print("KERNEL_OK")
</pallas_src>

<mosaic_0001>
module attributes {stable_mosaic.version = 11 : i64} {
  func.func @mlp_ce_kernel(%arg0: i32, %arg1: memref<16x102xbf16, #tpu.memory_space<vmem>>, %arg2: memref<16x1xi32, #tpu.memory_space<vmem>>, %arg3: memref<102x20xbf16, #tpu.memory_space<vmem>>, %arg4: memref<1x20xf32, #tpu.memory_space<vmem>>, %arg5: memref<20x20xbf16, #tpu.memory_space<vmem>>, %arg6: memref<1x20xf32, #tpu.memory_space<vmem>>, %arg7: memref<20x20xbf16, #tpu.memory_space<vmem>>, %arg8: memref<1x20xf32, #tpu.memory_space<vmem>>, %arg9: memref<20x9xbf16, #tpu.memory_space<vmem>>, %arg10: memref<1x9xf32, #tpu.memory_space<vmem>>, %arg11: memref<16x1xf32, #tpu.memory_space<vmem>>) attributes {dimension_semantics = [#tpu.dimension_semantics<parallel>], iteration_bounds = array<i64: 4>, scalar_prefetch = 0 : i64, scratch_operands = 0 : i64, tpu.core_type = #tpu.core_type<tc>, window_params = [{transform_indices = @transform_0, window_bounds = array<i64: 16, 102>}, {transform_indices = @transform_1, window_bounds = array<i64: 16, 1>}, {pipeline_mode = #tpu.pipeline_mode<synchronous>, transform_indices = @transform_2, window_bounds = array<i64: 102, 20>}, {pipeline_mode = #tpu.pipeline_mode<synchronous>, transform_indices = @transform_3, window_bounds = array<i64: 1, 20>}, {pipeline_mode = #tpu.pipeline_mode<synchronous>, transform_indices = @transform_4, window_bounds = array<i64: 20, 20>}, {pipeline_mode = #tpu.pipeline_mode<synchronous>, transform_indices = @transform_5, window_bounds = array<i64: 1, 20>}, {pipeline_mode = #tpu.pipeline_mode<synchronous>, transform_indices = @transform_6, window_bounds = array<i64: 20, 20>}, {pipeline_mode = #tpu.pipeline_mode<synchronous>, transform_indices = @transform_7, window_bounds = array<i64: 1, 20>}, {pipeline_mode = #tpu.pipeline_mode<synchronous>, transform_indices = @transform_8, window_bounds = array<i64: 20, 9>}, {pipeline_mode = #tpu.pipeline_mode<synchronous>, transform_indices = @transform_9, window_bounds = array<i64: 1, 9>}, {transform_indices = @transform_10, window_bounds = array<i64: 16, 1>}]} {
    %c0 = arith.constant 0 : index
    %c0_0 = arith.constant 0 : index
    %0 = vector.load %arg1[%c0, %c0_0] : memref<16x102xbf16, #tpu.memory_space<vmem>>, vector<16x102xbf16>
    %c0_1 = arith.constant 0 : index
    %c0_2 = arith.constant 0 : index
    %1 = vector.load %arg3[%c0_1, %c0_2] : memref<102x20xbf16, #tpu.memory_space<vmem>>, vector<102x20xbf16>
    %cst = arith.constant dense<0.000000e+00> : vector<16x20xf32>
    %2 = tpu.matmul %0, %1, %cst {dimension_numbers = #tpu.dot_dimension_numbers<[1], [0], [0], [1], [0, 0, 1, 1], [], []>} : vector<16x102xbf16>, vector<102x20xbf16>, vector<16x20xf32> -> vector<16x20xf32>
    %c0_3 = arith.constant 0 : index
    %c0_4 = arith.constant 0 : index
    %3 = vector.load %arg4[%c0_3, %c0_4] : memref<1x20xf32, #tpu.memory_space<vmem>>, vector<1x20xf32>
    %4 = vector.broadcast %3 : vector<1x20xf32> to vector<16x20xf32>
    %5 = arith.addf %2, %4 : vector<16x20xf32>
    %6 = arith.negf %5 : vector<16x20xf32>
    %7 = math.exp %6 : vector<16x20xf32>
    %cst_5 = arith.constant 1.000000e+00 : f32
    %8 = vector.broadcast %cst_5 : f32 to vector<16x20xf32>
    %9 = arith.addf %8, %7 : vector<16x20xf32>
    %10 = arith.divf %8, %9 : vector<16x20xf32>
    %11 = arith.truncf %10 : vector<16x20xf32> to vector<16x20xbf16>
    %c0_6 = arith.constant 0 : index
    %c0_7 = arith.constant 0 : index
    %12 = vector.load %arg5[%c0_6, %c0_7] : memref<20x20xbf16, #tpu.memory_space<vmem>>, vector<20x20xbf16>
    %cst_8 = arith.constant dense<0.000000e+00> : vector<16x20xf32>
    %13 = tpu.matmul %11, %12, %cst_8 {dimension_numbers = #tpu.dot_dimension_numbers<[1], [0], [0], [1], [0, 0, 1, 1], [], []>} : vector<16x20xbf16>, vector<20x20xbf16>, vector<16x20xf32> -> vector<16x20xf32>
    %c0_9 = arith.constant 0 : index
    %c0_10 = arith.constant 0 : index
    %14 = vector.load %arg6[%c0_9, %c0_10] : memref<1x20xf32, #tpu.memory_space<vmem>>, vector<1x20xf32>
    %15 = vector.broadcast %14 : vector<1x20xf32> to vector<16x20xf32>
    %16 = arith.addf %13, %15 : vector<16x20xf32>
    %17 = arith.negf %16 : vector<16x20xf32>
    %18 = math.exp %17 : vector<16x20xf32>
    %cst_11 = arith.constant 1.000000e+00 : f32
    %19 = vector.broadcast %cst_11 : f32 to vector<16x20xf32>
    %20 = arith.addf %19, %18 : vector<16x20xf32>
    %21 = arith.divf %19, %20 : vector<16x20xf32>
    %22 = arith.truncf %21 : vector<16x20xf32> to vector<16x20xbf16>
    %c0_12 = arith.constant 0 : index
    %c0_13 = arith.constant 0 : index
    %23 = vector.load %arg7[%c0_12, %c0_13] : memref<20x20xbf16, #tpu.memory_space<vmem>>, vector<20x20xbf16>
    %cst_14 = arith.constant dense<0.000000e+00> : vector<16x20xf32>
    %24 = tpu.matmul %22, %23, %cst_14 {dimension_numbers = #tpu.dot_dimension_numbers<[1], [0], [0], [1], [0, 0, 1, 1], [], []>} : vector<16x20xbf16>, vector<20x20xbf16>, vector<16x20xf32> -> vector<16x20xf32>
    %c0_15 = arith.constant 0 : index
    %c0_16 = arith.constant 0 : index
    %25 = vector.load %arg8[%c0_15, %c0_16] : memref<1x20xf32, #tpu.memory_space<vmem>>, vector<1x20xf32>
    %26 = vector.broadcast %25 : vector<1x20xf32> to vector<16x20xf32>
    %27 = arith.addf %24, %26 : vector<16x20xf32>
    %28 = arith.negf %27 : vector<16x20xf32>
    %29 = math.exp %28 : vector<16x20xf32>
    %cst_17 = arith.constant 1.000000e+00 : f32
    %30 = vector.broadcast %cst_17 : f32 to vector<16x20xf32>
    %31 = arith.addf %30, %29 : vector<16x20xf32>
    %32 = arith.divf %30, %31 : vector<16x20xf32>
    %33 = arith.truncf %32 : vector<16x20xf32> to vector<16x20xbf16>
    %c0_18 = arith.constant 0 : index
    %c0_19 = arith.constant 0 : index
    %34 = vector.load %arg9[%c0_18, %c0_19] : memref<20x9xbf16, #tpu.memory_space<vmem>>, vector<20x9xbf16>
    %cst_20 = arith.constant dense<0.000000e+00> : vector<16x9xf32>
    %35 = tpu.matmul %33, %34, %cst_20 {dimension_numbers = #tpu.dot_dimension_numbers<[1], [0], [0], [1], [0, 0, 1, 1], [], []>} : vector<16x20xbf16>, vector<20x9xbf16>, vector<16x9xf32> -> vector<16x9xf32>
    %c0_21 = arith.constant 0 : index
    %c0_22 = arith.constant 0 : index
    %36 = vector.load %arg10[%c0_21, %c0_22] : memref<1x9xf32, #tpu.memory_space<vmem>>, vector<1x9xf32>
    %37 = vector.broadcast %36 : vector<1x9xf32> to vector<16x9xf32>
    %38 = arith.addf %35, %37 : vector<16x9xf32>
    %cst_23 = arith.constant dense<0xFF800000> : vector<16xf32>
    %39 = vector.multi_reduction <maximumf>, %38, %cst_23 [1] : vector<16x9xf32> to vector<16xf32>
    %40 = vector.shape_cast %39 : vector<16xf32> to vector<16x1xf32>
    %41 = vector.broadcast %40 : vector<16x1xf32> to vector<16x9xf32>
    %42 = arith.subf %38, %41 : vector<16x9xf32>
    %43 = math.exp %42 : vector<16x9xf32>
    %cst_24 = arith.constant dense<0.000000e+00> : vector<16xf32>
    %44 = vector.multi_reduction <add>, %43, %cst_24 [1] : vector<16x9xf32> to vector<16xf32>
    %45 = vector.shape_cast %44 : vector<16xf32> to vector<16x1xf32>
    %46 = math.log %45 : vector<16x1xf32>
    %47 = arith.addf %46, %40 : vector<16x1xf32>
    %48 = tpu.iota {dimensions = array<i32: 1>} : vector<16x9xi32>
    %c0_25 = arith.constant 0 : index
    %c0_26 = arith.constant 0 : index
    %49 = vector.load %arg2[%c0_25, %c0_26] : memref<16x1xi32, #tpu.memory_space<vmem>>, vector<16x1xi32>
    %50 = vector.broadcast %49 : vector<16x1xi32> to vector<16x9xi32>
    %51 = arith.cmpi eq, %48, %50 : vector<16x9xi32>
    %cst_27 = arith.constant 0.000000e+00 : f32
    %52 = vector.broadcast %cst_27 : f32 to vector<16x9xf32>
    %53 = arith.select %51, %38, %52 : vector<16x9xi1>, vector<16x9xf32>
    %cst_28 = arith.constant dense<0.000000e+00> : vector<16xf32>
    %54 = vector.multi_reduction <add>, %53, %cst_28 [1] : vector<16x9xf32> to vector<16xf32>
    %55 = vector.shape_cast %54 : vector<16xf32> to vector<16x1xf32>
    %56 = arith.subf %47, %55 : vector<16x1xf32>
    %c16_i32 = arith.constant 16 : i32
    %57 = arith.muli %arg0, %c16_i32 : i32
    %58 = tpu.iota {dimensions = array<i32: 0>} : vector<16x1xi32>
    %59 = vector.broadcast %57 : i32 to vector<16x1xi32>
    %60 = arith.addi %59, %58 : vector<16x1xi32>
    %c50_i32 = arith.constant 50 : i32
    %61 = vector.broadcast %c50_i32 : i32 to vector<16x1xi32>
    %62 = arith.cmpi slt, %60, %61 : vector<16x1xi32>
    %cst_29 = arith.constant 0.000000e+00 : f32
    %63 = vector.broadcast %cst_29 : f32 to vector<16x1xf32>
    %64 = arith.select %62, %56, %63 : vector<16x1xi1>, vector<16x1xf32>
    %c0_30 = arith.constant 0 : index
    %c0_31 = arith.constant 0 : index
    %65 = vector.load %arg11[%c0_30, %c0_31] : memref<16x1xf32, #tpu.memory_space<vmem>>, vector<16x1xf32>
    tpu.vector_store %arg11[%c0_30, %c0_31], %64 {strides = array<i32>} : memref<16x1xf32, #tpu.memory_space<vmem>>, vector<16x1xf32>,
    return
  }
  func.func @transform_0(%arg0: i32) -> (i32, i32) {
    %c0_i32 = arith.constant 0 : i32
    %c0_i32_0 = arith.constant 0 : i32
    return %arg0, %c0_i32 : i32, i32
  }
  func.func @transform_1(%arg0: i32) -> (i32, i32) {
    %c0_i32 = arith.constant 0 : i32
    %c0_i32_0 = arith.constant 0 : i32
    return %arg0, %c0_i32 : i32, i32
  }
  func.func @transform_2(%arg0: i32) -> (i32, i32) {
    %c0_i32 = arith.constant 0 : i32
    %c0_i32_0 = arith.constant 0 : i32
    %c0_i32_1 = arith.constant 0 : i32
    return %c0_i32, %c0_i32_0 : i32, i32
  }
  func.func @transform_3(%arg0: i32) -> (i32, i32) {
    %c0_i32 = arith.constant 0 : i32
    %c0_i32_0 = arith.constant 0 : i32
    %c0_i32_1 = arith.constant 0 : i32
    return %c0_i32, %c0_i32_0 : i32, i32
  }
  func.func @transform_4(%arg0: i32) -> (i32, i32) {
    %c0_i32 = arith.constant 0 : i32
    %c0_i32_0 = arith.constant 0 : i32
    %c0_i32_1 = arith.constant 0 : i32
    return %c0_i32, %c0_i32_0 : i32, i32
  }
  func.func @transform_5(%arg0: i32) -> (i32, i32) {
    %c0_i32 = arith.constant 0 : i32
    %c0_i32_0 = arith.constant 0 : i32
    %c0_i32_1 = arith.constant 0 : i32
    return %c0_i32, %c0_i32_0 : i32, i32
  }
  func.func @transform_6(%arg0: i32) -> (i32, i32) {
    %c0_i32 = arith.constant 0 : i32
    %c0_i32_0 = arith.constant 0 : i32
    %c0_i32_1 = arith.constant 0 : i32
    return %c0_i32, %c0_i32_0 : i32, i32
  }
  func.func @transform_7(%arg0: i32) -> (i32, i32) {
    %c0_i32 = arith.constant 0 : i32
    %c0_i32_0 = arith.constant 0 : i32
    %c0_i32_1 = arith.constant 0 : i32
    return %c0_i32, %c0_i32_0 : i32, i32
  }
  func.func @transform_8(%arg0: i32) -> (i32, i32) {
    %c0_i32 = arith.constant 0 : i32
    %c0_i32_0 = arith.constant 0 : i32
    %c0_i32_1 = arith.constant 0 : i32
    return %c0_i32, %c0_i32_0 : i32, i32
  }
  func.func @transform_9(%arg0: i32) -> (i32, i32) {
    %c0_i32 = arith.constant 0 : i32
    %c0_i32_0 = arith.constant 0 : i32
    %c0_i32_1 = arith.constant 0 : i32
    return %c0_i32, %c0_i32_0 : i32, i32
  }
  func.func @transform_10(%arg0: i32) -> (i32, i32) {
    %c0_i32 = arith.constant 0 : i32
    %c0_i32_0 = arith.constant 0 : i32
    return %arg0, %c0_i32 : i32, i32
  }
}

</mosaic_0001>

<llo_original>
// kernel: tpu_custom_call.1
$region0: #{tpu_custom_call.1}
  #allocation0 [shape = 'u32[]', space=smem, size = 0x4, offset = 0x4, fixed_abs, tag = 'smem constant byte address 0x4 - core index']
  #allocation1 [shape = 'u32[72,128]{1,0:T(1,128)}', space=vmem, size = 0x9000, scoped, tag = 'internal scratch']
  %s0 = inlined_call_operand.vmem [shape: bf16[64,102], index: 0, kind: input, shape index: {}]
  %s1 = inlined_call_operand.vmem [shape: s32[64,1], index: 1, kind: input, shape index: {}]
  %s2 = inlined_call_operand.vmem [shape: bf16[102,20], index: 2, kind: input, shape index: {}]
  %s3 = inlined_call_operand.vmem [shape: f32[1,20], index: 3, kind: input, shape index: {}]
  %s4 = inlined_call_operand.vmem [shape: bf16[20,20], index: 4, kind: input, shape index: {}]
  %s5 = inlined_call_operand.vmem [shape: f32[1,20], index: 5, kind: input, shape index: {}]
  %s6 = inlined_call_operand.vmem [shape: bf16[20,20], index: 6, kind: input, shape index: {}]
  %s7 = inlined_call_operand.vmem [shape: f32[1,20], index: 7, kind: input, shape index: {}]
  %s8 = inlined_call_operand.vmem [shape: bf16[20,9], index: 8, kind: input, shape index: {}]
  %s9 = inlined_call_operand.vmem [shape: f32[1,9], index: 9, kind: input, shape index: {}]
  %s10 = inlined_call_operand.vmem [shape: f32[64,1], index: 10, kind: output, shape index: {}]
  %s11 = sld [smem:[#allocation0]]
  $region73: #{tpu_custom_call.1} parent=0
    _
  %s13 = ssub.s32 1, %s11
  %s14 = scalar_select 0, %s13, %s11
  loop: start=0, step=1, limit=6
  $region2: #{tpu_custom_call.1} parent=0 // loop_pre_header
    _
  $region3: #{tpu_custom_call.1} parent=0 // loop_header
    %s16 = sphi 0, %s20
    %p17 = scmp.ge.s32.totalorder %s16, 6
    %s26 = sphi 0, %s28
    %s29 = sphi 0, %s26
    %s30 = sphi 0, %s29
    %s46 = sphi 0, %s30
    %s52 = sphi 0, %s54
    %s55 = sphi 0, %s52
    %s56 = sphi 0, %s55
    %s72 = sphi 0, %s56
    %s76 = sphi 0, %s76
    %s78 = sphi 0, %s76
    %s79 = sphi 0, %s78
    %s93 = sphi 0, %s79
    %s97 = sphi 0, %s97
    %s99 = sphi 0, %s97
    %s100 = sphi 0, %s99
    %s114 = sphi 0, %s100
    %s118 = sphi 0, %s118
    %s120 = sphi 0, %s118
    %s121 = sphi 0, %s120
    %s135 = sphi 0, %s121
    %s139 = sphi 0, %s139
    %s141 = sphi 0, %s139
    %s142 = sphi 0, %s141
    %s156 = sphi 0, %s142
    %s160 = sphi 0, %s160
    %s162 = sphi 0, %s160
    %s163 = sphi 0, %s162
    %s177 = sphi 0, %s163
    %s181 = sphi 0, %s181
    %s183 = sphi 0, %s181
    %s184 = sphi 0, %s183
    %s198 = sphi 0, %s184
    %s202 = sphi 0, %s202
    %s204 = sphi 0, %s202
    %s205 = sphi 0, %s204
    %s219 = sphi 0, %s205
    %s223 = sphi 0, %s223
    %s225 = sphi 0, %s223
    %s226 = sphi 0, %s225
    %s240 = sphi 0, %s226
    %s246 = sphi 0, %s248
    %s249 = sphi 0, %s246
    %s250 = sphi 0, %s249
    %s266 = sphi 0, %s250
  $region4: #{tpu_custom_call.1} parent=0 // loop_header_branch
    %19 = sbr.rel (%p17) target = $region8
  $region5: #{tpu_custom_call.1} parent=0 // loop_body
    %s21 = ssub.s32 %s16, 1
    %s22 = ssub.s32 %s16, 2
    %s23 = sadd.s32 %s16, 1
    %s24 = ssub.s32 %s16, %s23
    %p25 = scmp.eq.s32.totalorder %s24, 0
    %s27 = sadd.s32 %s26, 1
    %s28 = scalar_select %p25, %s26, %s27
    %p31 = pneg %p25
    %p32 = scmp.eq.s32.totalorder %s16, 3
    %p33 = por %p31, %p32
    %p34 = scmp.ne.s32.totalorder %s26, %s29
    %p35 = scmp.eq.s32.totalorder %s16, 0
    %p36 = por %p34, %p35
    %p37 = scmp.ne.s32.totalorder %s26, %s29
    %p38 = scmp.eq.s32.totalorder %s21, 3
    %p39 = por %p37, %p38
    %p40 = scmp.ne.s32.totalorder %s29, %s30
    %p41 = scmp.eq.s32.totalorder %s21, 0
    %p42 = por %p40, %p41
    %p43 = scmp.ne.s32.totalorder %s29, %s30
    %p44 = scmp.eq.s32.totalorder %s22, 3
    %p45 = por %p43, %p44
    %p47 = scmp.ne.s32.totalorder %s30, %s46
    %p48 = scmp.eq.s32.totalorder %s22, 0
    %p49 = por %p47, %p48
    %s50 = ssub.s32 %s16, %s23
    %p51 = scmp.eq.s32.totalorder %s50, 0
    %s53 = sadd.s32 %s52, 1
    %s54 = scalar_select %p51, %s52, %s53
    %p57 = pneg %p51
    %p58 = scmp.eq.s32.totalorder %s16, 3
    %p59 = por %p57, %p58
    %p60 = scmp.ne.s32.totalorder %s52, %s55
    %p61 = scmp.eq.s32.totalorder %s16, 0
    %p62 = por %p60, %p61
    %p63 = scmp.ne.s32.totalorder %s52, %s55
    %p64 = scmp.eq.s32.totalorder %s21, 3
    %p65 = por %p63, %p64
    %p66 = scmp.ne.s32.totalorder %s55, %s56
    %p67 = scmp.eq.s32.totalorder %s21, 0
    %p68 = por %p66, %p67
    %p69 = scmp.ne.s32.totalorder %s55, %s56
    %p70 = scmp.eq.s32.totalorder %s22, 3
    %p71 = por %p69, %p70
    %p73 = scmp.ne.s32.totalorder %s56, %s72
    %p74 = scmp.eq.s32.totalorder %s22, 0
    %p75 = por %p73, %p74
    %s77 = sadd.s32 %s76, 1
    %p80 = scmp.eq.s32.totalorder %s16, 3
    %p81 = scmp.ne.s32.totalorder %s76, %s78
    %p82 = scmp.eq.s32.totalorder %s16, 0
    %p83 = por %p81, %p82
    %p84 = scmp.ne.s32.totalorder %s76, %s78
    %p85 = scmp.eq.s32.totalorder %s21, 3
    %p86 = por %p84, %p85
    %p87 = scmp.ne.s32.totalorder %s78, %s79
    %p88 = scmp.eq.s32.totalorder %s21, 0
    %p89 = por %p87, %p88
    %p90 = scmp.ne.s32.totalorder %s78, %s79
    %p91 = scmp.eq.s32.totalorder %s22, 3
    %p92 = por %p90, %p91
    %p94 = scmp.ne.s32.totalorder %s79, %s93
    %p95 = scmp.eq.s32.totalorder %s22, 0
    %p96 = por %p94, %p95
    %s98 = sadd.s32 %s97, 1
    %p101 = scmp.eq.s32.totalorder %s16, 3
    %p102 = scmp.ne.s32.totalorder %s97, %s99
    %p103 = scmp.eq.s32.totalorder %s16, 0
    %p104 = por %p102, %p103
    %p105 = scmp.ne.s32.totalorder %s97, %s99
    %p106 = scmp.eq.s32.totalorder %s21, 3
    %p107 = por %p105, %p106
    %p108 = scmp.ne.s32.totalorder %s99, %s100
    %p109 = scmp.eq.s32.totalorder %s21, 0
    %p110 = por %p108, %p109
    %p111 = scmp.ne.s32.totalorder %s99, %s100
    %p112 = scmp.eq.s32.totalorder %s22, 3
    %p113 = por %p111, %p112
    %p115 = scmp.ne.s32.totalorder %s100, %s114
    %p116 = scmp.eq.s32.totalorder %s22, 0
    %p117 = por %p115, %p116
    %s119 = sadd.s32 %s118, 1
    %p122 = scmp.eq.s32.totalorder %s16, 3
    %p123 = scmp.ne.s32.totalorder %s118, %s120
    %p124 = scmp.eq.s32.totalorder %s16, 0
    %p125 = por %p123, %p124
    %p126 = scmp.ne.s32.totalorder %s118, %s120
    %p127 = scmp.eq.s32.totalorder %s21, 3
    %p128 = por %p126, %p127
    %p129 = scmp.ne.s32.totalorder %s120, %s121
    %p130 = scmp.eq.s32.totalorder %s21, 0
    %p131 = por %p129, %p130
    %p132 = scmp.ne.s32.totalorder %s120, %s121
    %p133 = scmp.eq.s32.totalorder %s22, 3
    %p134 = por %p132, %p133
    %p136 = scmp.ne.s32.totalorder %s121, %s135
    %p137 = scmp.eq.s32.totalorder %s22, 0
    %p138 = por %p136, %p137
    %s140 = sadd.s32 %s139, 1
    %p143 = scmp.eq.s32.totalorder %s16, 3
    %p144 = scmp.ne.s32.totalorder %s139, %s141
    %p145 = scmp.eq.s32.totalorder %s16, 0
    %p146 = por %p144, %p145
    %p147 = scmp.ne.s32.totalorder %s139, %s141
    %p148 = scmp.eq.s32.totalorder %s21, 3
    %p149 = por %p147, %p148
    %p150 = scmp.ne.s32.totalorder %s141, %s142
    %p151 = scmp.eq.s32.totalorder %s21, 0
    %p152 = por %p150, %p151
    %p153 = scmp.ne.s32.totalorder %s141, %s142
    %p154 = scmp.eq.s32.totalorder %s22, 3
    %p155 = por %p153, %p154
    %p157 = scmp.ne.s32.totalorder %s142, %s156
    %p158 = scmp.eq.s32.totalorder %s22, 0
    %p159 = por %p157, %p158
    %s161 = sadd.s32 %s160, 1
    %p164 = scmp.eq.s32.totalorder %s16, 3
    %p165 = scmp.ne.s32.totalorder %s160, %s162
    %p166 = scmp.eq.s32.totalorder %s16, 0
    %p167 = por %p165, %p166
    %p168 = scmp.ne.s32.totalorder %s160, %s162
    %p169 = scmp.eq.s32.totalorder %s21, 3
    %p170 = por %p168, %p169
    %p171 = scmp.ne.s32.totalorder %s162, %s163
    %p172 = scmp.eq.s32.totalorder %s21, 0
    %p173 = por %p171, %p172
    %p174 = scmp.ne.s32.totalorder %s162, %s163
    %p175 = scmp.eq.s32.totalorder %s22, 3
    %p176 = por %p174, %p175
    %p178 = scmp.ne.s32.totalorder %s163, %s177
    %p179 = scmp.eq.s32.totalorder %s22, 0
    %p180 = por %p178, %p179
    %s182 = sadd.s32 %s181, 1
    %p185 = scmp.eq.s32.totalorder %s16, 3
    %p186 = scmp.ne.s32.totalorder %s181, %s183
    %p187 = scmp.eq.s32.totalorder %s16, 0
    %p188 = por %p186, %p187
    %p189 = scmp.ne.s32.totalorder %s181, %s183
    %p190 = scmp.eq.s32.totalorder %s21, 3
    %p191 = por %p189, %p190
    %p192 = scmp.ne.s32.totalorder %s183, %s184
    %p193 = scmp.eq.s32.totalorder %s21, 0
    %p194 = por %p192, %p193
    %p195 = scmp.ne.s32.totalorder %s183, %s184
    %p196 = scmp.eq.s32.totalorder %s22, 3
    %p197 = por %p195, %p196
    %p199 = scmp.ne.s32.totalorder %s184, %s198
    %p200 = scmp.eq.s32.totalorder %s22, 0
    %p201 = por %p199, %p200
    %s203 = sadd.s32 %s202, 1
    %p206 = scmp.eq.s32.totalorder %s16, 3
    %p207 = scmp.ne.s32.totalorder %s202, %s204
    %p208 = scmp.eq.s32.totalorder %s16, 0
    %p209 = por %p207, %p208
    %p210 = scmp.ne.s32.totalorder %s202, %s204
    %p211 = scmp.eq.s32.totalorder %s21, 3
    %p212 = por %p210, %p211
    %p213 = scmp.ne.s32.totalorder %s204, %s205
    %p214 = scmp.eq.s32.totalorder %s21, 0
    %p215 = por %p213, %p214
    %p216 = scmp.ne.s32.totalorder %s204, %s205
    %p217 = scmp.eq.s32.totalorder %s22, 3
    %p218 = por %p216, %p217
    %p220 = scmp.ne.s32.totalorder %s205, %s219
    %p221 = scmp.eq.s32.totalorder %s22, 0
    %p222 = por %p220, %p221
    %s224 = sadd.s32 %s223, 1
    %p227 = scmp.eq.s32.totalorder %s16, 3
    %p228 = scmp.ne.s32.totalorder %s223, %s225
    %p229 = scmp.eq.s32.totalorder %s16, 0
    %p230 = por %p228, %p229
    %p231 = scmp.ne.s32.totalorder %s223, %s225
    %p232 = scmp.eq.s32.totalorder %s21, 3
    %p233 = por %p231, %p232
    %p234 = scmp.ne.s32.totalorder %s225, %s226
    %p235 = scmp.eq.s32.totalorder %s21, 0
    %p236 = por %p234, %p235
    %p237 = scmp.ne.s32.totalorder %s225, %s226
    %p238 = scmp.eq.s32.totalorder %s22, 3
    %p239 = por %p237, %p238
    %p241 = scmp.ne.s32.totalorder %s226, %s240
    %p242 = scmp.eq.s32.totalorder %s22, 0
    %p243 = por %p241, %p242
    %s244 = ssub.s32 %s16, %s23
    %p245 = scmp.eq.s32.totalorder %s244, 0
    %s247 = sadd.s32 %s246, 1
    %s248 = scalar_select %p245, %s246, %s247
    %p251 = pneg %p245
    %p252 = scmp.eq.s32.totalorder %s16, 3
    %p253 = por %p251, %p252
    %p254 = scmp.ne.s32.totalorder %s246, %s249
    %p255 = scmp.eq.s32.totalorder %s16, 0
    %p256 = por %p254, %p255
    %p257 = scmp.ne.s32.totalorder %s246, %s249
    %p258 = scmp.eq.s32.totalorder %s21, 3
    %p259 = por %p257, %p258
    %p260 = scmp.ne.s32.totalorder %s249, %s250
    %p261 = scmp.eq.s32.totalorder %s21, 0
    %p262 = por %p260, %p261
    %p263 = scmp.ne.s32.totalorder %s249, %s250
    %p264 = scmp.eq.s32.totalorder %s22, 3
    %p265 = por %p263, %p264
    %p267 = scmp.ne.s32.totalorder %s250, %s266
    %p268 = scmp.eq.s32.totalorder %s22, 0
    %p269 = por %p267, %p268
    %p270 = scmp.le.s32.totalorder 1, %s16
    %p271 = scmp.lt.s32.totalorder %s16, 5
    %p272 = pnand %p270, %p271
    %p273 = pneg %p272
    // Predicated region
    $region9: #{tpu_custom_call.1} parent=5 // pred_check
      _
    $region10: #{tpu_custom_call.1} parent=5 // pred_check_branch
      %275 = sbr.rel (%p272) target = $region12
    $region11: #{tpu_custom_call.1} parent=5 // pred_region
      %s276 = ssub.s32 %s16, 1
      // Predicated region
      $region13: #{tpu_custom_call.1} parent=11 // pred_check
        %p277 = pneg %p89
      $region14: #{tpu_custom_call.1} parent=11 // pred_check_branch
        %279 = sbr.rel (%p277) target = $region16
      $region15: #{tpu_custom_call.1} parent=11 // pred_region
        _
      $region16: #{tpu_custom_call.1} parent=11 // pred_fallthru
        _
      // Predicated region
      $region17: #{tpu_custom_call.1} parent=11 // pred_check
        %p280 = pneg %p110
      $region18: #{tpu_custom_call.1} parent=11 // pred_check_branch
        %282 = sbr.rel (%p280) target = $region20
      $region19: #{tpu_custom_call.1} parent=11 // pred_region
        _
      $region20: #{tpu_custom_call.1} parent=11 // pred_fallthru
        _
      // Predicated region
      $region21: #{tpu_custom_call.1} parent=11 // pred_check
        %p283 = pneg %p131
      $region22: #{tpu_custom_call.1} parent=11 // pred_check_branch
        %285 = sbr.rel (%p283) target = $region24
      $region23: #{tpu_custom_call.1} parent=11 // pred_region
        _
      $region24: #{tpu_custom_call.1} parent=11 // pred_fallthru
        _
      // Predicated region
      $region25: #{tpu_custom_call.1} parent=11 // pred_check
        %p286 = pneg %p152
      $region26: #{tpu_custom_call.1} parent=11 // pred_check_branch
        %288 = sbr.rel (%p286) target = $region28
      $region27: #{tpu_custom_call.1} parent=11 // pred_region
        _
      $region28: #{tpu_custom_call.1} parent=11 // pred_fallthru
        _
      // Predicated region
      $region29: #{tpu_custom_call.1} parent=11 // pred_check
        %p289 = pneg %p173
      $region30: #{tpu_custom_call.1} parent=11 // pred_check_branch
        %291 = sbr.rel (%p289) target = $region32
      $region31: #{tpu_custom_call.1} parent=11 // pred_region
        _
      $region32: #{tpu_custom_call.1} parent=11 // pred_fallthru
        _
      // Predicated region
      $region33: #{tpu_custom_call.1} parent=11 // pred_check
        %p292 = pneg %p194
      $region34: #{tpu_custom_call.1} parent=11 // pred_check_branch
        %294 = sbr.rel (%p292) target = $region36
      $region35: #{tpu_custom_call.1} parent=11 // pred_region
        _
      $region36: #{tpu_custom_call.1} parent=11 // pred_fallthru
        _
      // Predicated region
      $region37: #{tpu_custom_call.1} parent=11 // pred_check
        %p295 = pneg %p215
      $region38: #{tpu_custom_call.1} parent=11 // pred_check_branch
        %297 = sbr.rel (%p295) target = $region40
      $region39: #{tpu_custom_call.1} parent=11 // pred_region
        _
      $region40: #{tpu_custom_call.1} parent=11 // pred_fallthru
        _
      // Predicated region
      $region41: #{tpu_custom_call.1} parent=11 // pred_check
        %p298 = pneg %p236
      $region42: #{tpu_custom_call.1} parent=11 // pred_check_branch
        %300 = sbr.rel (%p298) target = $region44
      $region43: #{tpu_custom_call.1} parent=11 // pred_region
        _
      $region44: #{tpu_custom_call.1} parent=11 // pred_fallthru
        _
    $region12: #{tpu_custom_call.1} parent=5 // pred_fallthru
      _
    %p301 = scmp.lt.s32.totalorder %s16, 4
    // Predicated region
    $region45: #{tpu_custom_call.1} parent=5 // pred_check
      %p302 = pneg %p301
    $region46: #{tpu_custom_call.1} parent=5 // pred_check_branch
      %304 = sbr.rel (%p302) target = $region48
    $region47: #{tpu_custom_call.1} parent=5 // pred_region
      // Predicated region
      $region49: #{tpu_custom_call.1} parent=47 // pred_check
        %p305 = pneg %p36
      $region50: #{tpu_custom_call.1} parent=47 // pred_check_branch
        %307 = sbr.rel (%p305) target = $region52
      $region51: #{tpu_custom_call.1} parent=47 // pred_region
        %s308 = smul.u32 2, %s16
        %p309 = scmp.lt.s32.totalorder %s308, 7
        %s310 = scalar_select %p309, %s308, 7
        %s311 = smul.addr %s310, 4
        %s312 = scalar_lea.vmem %s0, %s311
        %s313 = smul.u32 2, %s16
      $region52: #{tpu_custom_call.1} parent=47 // pred_fallthru
        _
      // Predicated region
      $region53: #{tpu_custom_call.1} parent=47 // pred_check
        %p314 = pneg %p62
      $region54: #{tpu_custom_call.1} parent=47 // pred_check_branch
        %316 = sbr.rel (%p314) target = $region56
      $region55: #{tpu_custom_call.1} parent=47 // pred_region
        %s317 = smul.u32 2, %s16
        %p318 = scmp.lt.s32.totalorder %s317, 7
        %s319 = scalar_select %p318, %s317, 7
        %s320 = smul.addr %s319, 8
        %s321 = scalar_lea.vmem %s1, %s320
        %s322 = smul.u32 2, %s16
      $region56: #{tpu_custom_call.1} parent=47 // pred_fallthru
        _
    $region48: #{tpu_custom_call.1} parent=5 // pred_fallthru
      _
    %p323 = scmp.le.s32.totalorder 1, %s16
    %p324 = scmp.lt.s32.totalorder %s16, 5
    %p325 = pnand %p323, %p324
    %p326 = pneg %p325
    // Predicated region
    $region57: #{tpu_custom_call.1} parent=5 // pred_check
      _
    $region58: #{tpu_custom_call.1} parent=5 // pred_check_branch
      %328 = sbr.rel (%p325) target = $region60
    $region59: #{tpu_custom_call.1} parent=5 // pred_region
      %s329 = ssub.s32 %s16, 1
      %s330 = smul.u32 2, %s21
      %p331 = scmp.lt.s32.totalorder %s330, 7
      %s332 = scalar_select %p331, %s330, 7
      %s333 = smul.addr %s332, 4
      %s334 = scalar_lea.vmem %s0, %s333
      %p335 = pneg %p42
      %p336 = pneg %p39
      %s337 = smul.u32 2, %s21
      %p338 = scmp.lt.s32.totalorder %s337, 7
      %s339 = scalar_select %p338, %s337, 7
      %s340 = smul.addr %s339, 8
      %s341 = scalar_lea.vmem %s1, %s340
      %p342 = pneg %p68
      %p343 = pneg %p65
      %p344 = pneg %p89
      %p345 = pneg %p86
      %p346 = pneg %p110
      %p347 = pneg %p107
      %p348 = pneg %p131
      %p349 = pneg %p128
      %p350 = pneg %p152
      %p351 = pneg %p149
      %p352 = pneg %p173
      %p353 = pneg %p170
      %p354 = pneg %p194
      %p355 = pneg %p191
      %p356 = pneg %p215
      %p357 = pneg %p212
      %p358 = pneg %p236
      %p359 = pneg %p233
      %p360 = pneg %p262
      %p361 = pneg %p259
      %s362 = smul.u32 2, %s21
      %p363 = scmp.lt.s32.totalorder %s362, 7
      %s364 = scalar_select %p363, %s362, 7
      %s365 = smul.addr %s364, 8
      %s366 = scalar_lea.vmem %s10, %s365
      %s367 = smul.u32 2, %s21
      %p368 = scmp.lt.s32.totalorder %s367, 7
      %s369 = scalar_select %p368, %s367, 7
      %s370 = smul.addr %s369, 4
      %s371 = scalar_lea.vmem %s0, %s370
      %s372 = smul.u32 2, %s21
      %s373 = smul.u32 2, %s21
      %p374 = scmp.lt.s32.totalorder %s373, 7
      %s375 = scalar_select %p374, %s373, 7
      %s376 = smul.addr %s375, 8
      %s377 = scalar_lea.vmem %s1, %s376
      %s378 = smul.u32 2, %s21
      %s379 = smul.u32 2, %s21
      %p380 = scmp.lt.s32.totalorder %s379, 7
      %s381 = scalar_select %p380, %s379, 7
      %s382 = smul.addr %s381, 8
      %s383 = scalar_lea.vmem %s10, %s382
      %s384 = smul.u32 2, %s21
      %v386 = vld [vmem:[%s371] sm:$0xf]
      %v387 = vld [vmem:[%s371 + $0x4] sm:$0xf]
      %v388 = vld [vmem:[%s2] sm:$0xf]
      %v389 = vld [vmem:[%s2 + $0x4] sm:$0xf]
      %v390 = vld [vmem:[%s2 + $0x8] sm:$0xf]
      %v391 = vld [vmem:[%s2 + $0xc] sm:$0xf]
      %v392 = vld [vmem:[%s2 + $0x10] sm:$0xf]
      %v393 = vld [vmem:[%s2 + $0x14] sm:$0xf]
      %v394 = vld [vmem:[%s2 + $0x18] sm:$0xf]
      %v395 = vld [vmem:[%s2 + $0x1c] sm:$0xf]
      %v396 = vld [vmem:[%s2 + $0x20] sm:$0xf]
      %v397 = vld [vmem:[%s2 + $0x24] sm:$0xf]
      %v398 = vld [vmem:[%s2 + $0x28] sm:$0xf]
      %v399 = vld [vmem:[%s2 + $0x2c] sm:$0xf]
      %v400 = vld [vmem:[%s2 + $0x30] sm:$0x7]
      %v401 = vld [vmem:[%s3] sm:$0x1]
      %v403 = vperm.slane %v401, 0
      %v407 = vunpack.c.l.b16 %v386
      %v408 = vunpack.c.l.b16 %v387
      %v409 = vpack.c.b16 %v408, %v407
      %v423 = vunpack.c.l.b16 %v388
      %v424 = vunpack.c.l.b16 %v389
      %v425 = vunpack.c.l.b16 %v390
      %v426 = vunpack.c.l.b16 %v391
      %v427 = vunpack.c.l.b16 %v392
      %v428 = vunpack.c.l.b16 %v393
      %v429 = vunpack.c.l.b16 %v394
      %v430 = vunpack.c.l.b16 %v395
      %v431 = vunpack.c.l.b16 %v396
      %v432 = vunpack.c.l.b16 %v397
      %v433 = vunpack.c.l.b16 %v398
      %v434 = vunpack.c.l.b16 %v399
      %v435 = vunpack.c.l.b16 %v400
      %v436 = vpack.c.b16 %v424, %v423
      %v437 = vpack.c.b16 %v426, %v425
      %v438 = vpack.c.b16 %v428, %v427
      %v439 = vpack.c.b16 %v430, %v429
      %v440 = vpack.c.b16 %v432, %v431
      %v441 = vpack.c.b16 %v434, %v433
      %v442 = vpack.c.b16 %v435, %v435
      %vm449 = vcmask 834560
      %v451 = vsel %vm449, %v409, 0
      %vm453 = vcmask 1042432
      %v455 = vsel %vm453, %v442, 0
      %457 = vmatpush.bf16.msra.mxu0 0
      %458 = vmatpush.bf16.msra.mxu0 %v455
      %459 = vmatpush.bf16.msra.mxu0 %v441
      %460 = vmatpush.bf16.msra.mxu0 %v440
      %461 = vmatpush.bf16.msra.mxu0 %v439
      %462 = vmatpush.bf16.msra.mxu0 %v438
      %463 = vmatpush.bf16.msra.mxu0 %v437
      %464 = vmatpush.bf16.msra.mxu0 %v436
      %465 = vmatmul.bf16.gmra.mxu0 %v451
      %v466 = vpop.f32.mrf.mxu0
      %v467 = vadd.f32 %v403, %v466
      %v468 = vpop.f32.mrf.mxu0
      %v469 = vadd.f32 %v403, %v468
      %470 = vdwg.mxu0
      %v471 = vxor.u32 %v467, 2147483648
      %v472 = vxor.u32 %v469, 2147483648
      %v473 = vmul.f32 %v471, 1.442695
      %v474 = vpow.pop %v473
      %v475 = vmul.f32 %v472, 1.442695
      %v476 = vpow.pop %v475
      %v477 = vadd.f32 %v474, 1.0
      %v478 = vadd.f32 %v476, 1.0
      %v479 = vrcp.pop %v477
      %v480 = vmul.f32 %v477, %v479
      %v481 = vsub.f32 1.0, %v480
      %v482 = vmul.f32 %v479, %v481
      %v483 = vadd.f32 %v479, %v482
      %vm484 = vweird.f32 %v477
      %vm485 = vweird.f32 %v479
      %vm486 = vmor %vm484, %vm485
      %v487 = vsel %vm486, %v479, %v483
      %v488 = vand.u32 2147483647, %v477
      %vm489 = vcmp.eq.f32.partialorder %v488, 8.507059e+37
      %v490 = vand.u32 %v477, 2147483648
      %v491 = vor.u32 1.1754944e-38, %v490
      %v492 = vsel %vm489, %v491, %v487
      %v493 = vmul.f32 1.0, %v492
      %v494 = vrcp.pop %v478
      %v495 = vmul.f32 %v478, %v494
      %v496 = vsub.f32 1.0, %v495
      %v497 = vmul.f32 %v494, %v496
      %v498 = vadd.f32 %v494, %v497
      %vm499 = vweird.f32 %v478
      %vm500 = vweird.f32 %v494
      %vm501 = vmor %vm499, %vm500
      %v502 = vsel %vm501, %v494, %v498
      %v503 = vand.u32 2147483647, %v478
      %vm504 = vcmp.eq.f32.partialorder %v503, 8.507059e+37
      %v505 = vand.u32 %v478, 2147483648
      %v506 = vor.u32 1.1754944e-38, %v505
      %v507 = vsel %vm504, %v506, %v502
      %v508 = vmul.f32 1.0, %v507
      %v509 = vpack.c.bf16 %v508, %v493
      %v510 = vld [vmem:[%s4] sm:$0xf]
      %v511 = vld [vmem:[%s4 + $0x4] sm:$0xf]
      %v512 = vld [vmem:[%s4 + $0x8] sm:$0x3]
      %v513 = vld [vmem:[%s5] sm:$0x1]
      %v515 = vperm.slane %v513, 0
      %v520 = vunpack.c.l.b16 %v510
      %v521 = vunpack.c.l.b16 %v511
      %v522 = vunpack.c.l.b16 %v512
      %v523 = vpack.c.b16 %v521, %v520
      %v524 = vpack.c.b16 %v522, %v522
      %vm526 = vcmask 162816
      %v528 = vsel %vm526, %v509, 0
      %vm530 = vcmask 1041408
      %v532 = vsel %vm530, %v524, 0
      %534 = vmatpush.bf16.msra.mxu0 0
      %535 = vmatpush.bf16.msra.mxu0 0
      %536 = vmatpush.bf16.msra.mxu0 0
      %537 = vmatpush.bf16.msra.mxu0 0
      %538 = vmatpush.bf16.msra.mxu0 0
      %539 = vmatpush.bf16.msra.mxu0 0
      %540 = vmatpush.bf16.msra.mxu0 %v532
      %541 = vmatpush.bf16.msra.mxu0 %v523
      %542 = vmatmul.bf16.gmra.mxu0 %v528
      %v543 = vpop.f32.mrf.mxu0
      %v544 = vadd.f32 %v515, %v543
      %v545 = vpop.f32.mrf.mxu0
      %v546 = vadd.f32 %v515, %v545
      %547 = vdwg.mxu0
      %v548 = vxor.u32 %v544, 2147483648
      %v549 = vxor.u32 %v546, 2147483648
      %v550 = vmul.f32 %v548, 1.442695
      %v551 = vpow.pop %v550
      %v552 = vmul.f32 %v549, 1.442695
      %v553 = vpow.pop %v552
      %v554 = vadd.f32 %v551, 1.0
      %v555 = vadd.f32 %v553, 1.0
      %v556 = vrcp.pop %v554
      %v557 = vmul.f32 %v554, %v556
      %v558 = vsub.f32 1.0, %v557
      %v559 = vmul.f32 %v556, %v558
      %v560 = vadd.f32 %v556, %v559
      %vm561 = vweird.f32 %v554
      %vm562 = vweird.f32 %v556
      %vm563 = vmor %vm561, %vm562
      %v564 = vsel %vm563, %v556, %v560
      %v565 = vand.u32 2147483647, %v554
      %vm566 = vcmp.eq.f32.partialorder %v565, 8.507059e+37
      %v567 = vand.u32 %v554, 2147483648
      %v568 = vor.u32 1.1754944e-38, %v567
      %v569 = vsel %vm566, %v568, %v564
      %v570 = vmul.f32 1.0, %v569
      %v571 = vrcp.pop %v555
      %v572 = vmul.f32 %v555, %v571
      %v573 = vsub.f32 1.0, %v572
      %v574 = vmul.f32 %v571, %v573
      %v575 = vadd.f32 %v571, %v574
      %vm576 = vweird.f32 %v555
      %vm577 = vweird.f32 %v571
      %vm578 = vmor %vm576, %vm577
      %v579 = vsel %vm578, %v571, %v575
      %v580 = vand.u32 2147483647, %v555
      %vm581 = vcmp.eq.f32.partialorder %v580, 8.507059e+37
      %v582 = vand.u32 %v555, 2147483648
      %v583 = vor.u32 1.1754944e-38, %v582
      %v584 = vsel %vm581, %v583, %v579
      %v585 = vmul.f32 1.0, %v584
      %v586 = vpack.c.bf16 %v585, %v570
      %v587 = vld [vmem:[%s6] sm:$0xf]
      %v588 = vld [vmem:[%s6 + $0x4] sm:$0xf]
      %v589 = vld [vmem:[%s6 + $0x8] sm:$0x3]
      %v590 = vld [vmem:[%s7] sm:$0x1]
      %v592 = vperm.slane %v590, 0
      %v597 = vunpack.c.l.b16 %v587
      %v598 = vunpack.c.l.b16 %v588
      %v599 = vunpack.c.l.b16 %v589
      %v600 = vpack.c.b16 %v598, %v597
      %v601 = vpack.c.b16 %v599, %v599
      %v604 = vsel %vm526, %v586, 0
      %v607 = vsel %vm530, %v601, 0
      %609 = vmatpush.bf16.msra.mxu0 0
      %610 = vmatpush.bf16.msra.mxu0 0
      %611 = vmatpush.bf16.msra.mxu0 0
      %612 = vmatpush.bf16.msra.mxu0 0
      %613 = vmatpush.bf16.msra.mxu0 0
      %614 = vmatpush.bf16.msra.mxu0 0
      %615 = vmatpush.bf16.msra.mxu0 %v607
      %616 = vmatpush.bf16.msra.mxu0 %v600
      %617 = vmatmul.bf16.gmra.mxu0 %v604
      %v618 = vpop.f32.mrf.mxu0
      %v619 = vadd.f32 %v592, %v618
      %v620 = vpop.f32.mrf.mxu0
      %v621 = vadd.f32 %v592, %v620
      %622 = vdwg.mxu0
      %v623 = vxor.u32 %v619, 2147483648
      %v624 = vxor.u32 %v621, 2147483648
      %v625 = vmul.f32 %v623, 1.442695
      %v626 = vpow.pop %v625
      %v627 = vmul.f32 %v624, 1.442695
      %v628 = vpow.pop %v627
      %v629 = vadd.f32 %v626, 1.0
      %v630 = vadd.f32 %v628, 1.0
      %v631 = vrcp.pop %v629
      %v632 = vmul.f32 %v629, %v631
      %v633 = vsub.f32 1.0, %v632
      %v634 = vmul.f32 %v631, %v633
      %v635 = vadd.f32 %v631, %v634
      %vm636 = vweird.f32 %v629
      %vm637 = vweird.f32 %v631
      %vm638 = vmor %vm636, %vm637
      %v639 = vsel %vm638, %v631, %v635
      %v640 = vand.u32 2147483647, %v629
      %vm641 = vcmp.eq.f32.partialorder %v640, 8.507059e+37
      %v642 = vand.u32 %v629, 2147483648
      %v643 = vor.u32 1.1754944e-38, %v642
      %v644 = vsel %vm641, %v643, %v639
      %v645 = vmul.f32 1.0, %v644
      %v646 = vrcp.pop %v630
      %v647 = vmul.f32 %v630, %v646
      %v648 = vsub.f32 1.0, %v647
      %v649 = vmul.f32 %v646, %v648
      %v650 = vadd.f32 %v646, %v649
      %vm651 = vweird.f32 %v630
      %vm652 = vweird.f32 %v646
      %vm653 = vmor %vm651, %vm652
      %v654 = vsel %vm653, %v646, %v650
      %v655 = vand.u32 2147483647, %v630
      %vm656 = vcmp.eq.f32.partialorder %v655, 8.507059e+37
      %v657 = vand.u32 %v630, 2147483648
      %v658 = vor.u32 1.1754944e-38, %v657
      %v659 = vsel %vm656, %v658, %v654
      %v660 = vmul.f32 1.0, %v659
      %v661 = vpack.c.bf16 %v660, %v645
      %v662 = vld [vmem:[%s8] sm:$0xf]
      %v663 = vld [vmem:[%s8 + $0x4] sm:$0xf]
      %v664 = vld [vmem:[%s8 + $0x8] sm:$0x3]
      %v665 = vld [vmem:[%s9] sm:$0x1]
      %v667 = vperm.slane %v665, 0
      %v672 = vunpack.c.l.b16 %v662
      %v673 = vunpack.c.l.b16 %v663
      %v674 = vunpack.c.l.b16 %v664
      %v675 = vpack.c.b16 %v673, %v672
      %v676 = vpack.c.b16 %v674, %v674
      %v679 = vsel %vm526, %v661, 0
      %v682 = vsel %vm530, %v676, 0
      %684 = vmatpush.bf16.msra.mxu0 0
      %685 = vmatpush.bf16.msra.mxu0 0
      %686 = vmatpush.bf16.msra.mxu0 0
      %687 = vmatpush.bf16.msra.mxu0 0
      %688 = vmatpush.bf16.msra.mxu0 0
      %689 = vmatpush.bf16.msra.mxu0 0
      %690 = vmatpush.bf16.msra.mxu0 %v682
      %691 = vmatpush.bf16.msra.mxu0 %v675
      %692 = vmatmul.bf16.gmra.mxu0 %v679
      %v693 = vpop.f32.mrf.mxu0
      %v694 = vadd.f32 %v667, %v693
      %v695 = vpop.f32.mrf.mxu0
      %v696 = vadd.f32 %v667, %v695
      %697 = vdwg.mxu0
      %vm698 = vcmask 72704
      %v699 = vsel %vm698, %v694, -inf
      %700 = vmax.xlane.f32.xlu0 %v699
      %v701 = vpop.xlane.xlu0 %700
      %v702 = vsel %vm698, %v696, -inf
      %703 = vmax.xlane.f32.xlu0 %v702
      %v704 = vpop.xlane.xlu0 %703
      %v705 = vsub.f32 %v694, %v701
      %v706 = vsub.f32 %v696, %v704
      %v707 = vmul.f32 %v705, 1.442695
      %v708 = vpow.pop %v707
      %v709 = vmul.f32 %v706, 1.442695
      %v710 = vpow.pop %v709
      %v711 = vsel %vm698, %v708, 0.0
      %712 = vadd.xlane.f32.xlu0 %v711
      %v713 = vpop.xlane.xlu0 %712
      %v714 = vsel %vm698, %v710, 0.0
      %715 = vadd.xlane.f32.xlu0 %v714
      %v716 = vpop.xlane.xlu0 %715
      %v717 = vlog2.pop %v713
      %v718 = vmul.f32 %v717, 0.6931472
      %v719 = vlog2.pop %v716
      %v720 = vmul.f32 %v719, 0.6931472
      %v721 = vadd.f32 %v718, %v701
      %v722 = vadd.f32 %v720, %v704
      %v723 = vlaneseq
      %v724 = vand.u32 %v723, 127
      %v725 = vld [vmem:[%s377] sm:$0xff]
      %v726 = vld [vmem:[%s377 + $0x8] sm:$0xff]
      %727 = vset.pattern.permute.xlu0 0
      %728 = vperm.xlu0 %727, %v725
      %v729 = vpop.permute.xlu0 %728
      %730 = vset.pattern.permute.xlu0 0
      %731 = vperm.xlu0 %730, %v726
      %v732 = vpop.permute.xlu0 %731
      %vm733 = vcmp.eq.s32.totalorder %v724, %v729
      %vm734 = vcmp.eq.s32.totalorder %v724, %v732
      %v735 = vsel %vm733, %v694, 0.0
      %v736 = vsel %vm734, %v696, 0.0
      %v737 = vsel %vm698, %v735, 0.0
      %738 = vadd.xlane.f32.xlu0 %v737
      %v739 = vpop.xlane.xlu0 %738
      %v740 = vsel %vm698, %v736, 0.0
      %741 = vadd.xlane.f32.xlu0 %v740
      %v742 = vpop.xlane.xlu0 %741
      %v743 = vsub.f32 %v721, %v739
      %v744 = vsub.f32 %v722, %v742
      %s745 = smul.u32 %s21, 16
      %v746 = vlaneseq
      %v747 = vshrl.u32 %v746, 7
      %v748 = vadd.s32 %v747, 8
      %v749 = vstv %s745
      %v750 = vadd.s32 %v749, %v747
      %v751 = vadd.s32 %v749, %v748
      %vm752 = vcmp.lt.s32.totalorder %v750, 50
      %vm753 = vcmp.lt.s32.totalorder %v751, 50
      %v754 = vsel %vm752, %v743, 0.0
      %v755 = vsel %vm753, %v744, 0.0
      %vm756 = vcmask 7168
      %757 = vst.msk [vmem:[%s383] sm:$0xff] %vm756, %v754
      %758 = vst.msk [vmem:[%s383 + $0x8] sm:$0xff] %vm756, %v755
      %s759 = smul.u32 2, %s21
      %p760 = scmp.lt.s32.totalorder %s759, 7
      %s761 = scalar_select %p760, %s759, 7
      %s762 = smul.addr %s761, 8
      %s763 = scalar_lea.vmem %s10, %s762
      // Predicated region
      $region61: #{tpu_custom_call.1} parent=59 // pred_check
        %p764 = pneg %p259
      $region62: #{tpu_custom_call.1} parent=59 // pred_check_branch
        %766 = sbr.rel (%p764) target = $region64
      $region63: #{tpu_custom_call.1} parent=59 // pred_region
        %s767 = smul.u32 2, %s21
      $region64: #{tpu_custom_call.1} parent=59 // pred_fallthru
        _
    $region60: #{tpu_custom_call.1} parent=5 // pred_fallthru
      _
    %p768 = scmp.le.s32.totalorder 2, %s16
    // Predicated region
    $region65: #{tpu_custom_call.1} parent=5 // pred_check
      %p769 = pneg %p768
    $region66: #{tpu_custom_call.1} parent=5 // pred_check_branch
      %771 = sbr.rel (%p769) target = $region68
    $region67: #{tpu_custom_call.1} parent=5 // pred_region
      %s772 = ssub.s32 %s16, 2
      // Predicated region
      $region69: #{tpu_custom_call.1} parent=67 // pred_check
        %p773 = pneg %p265
      $region70: #{tpu_custom_call.1} parent=67 // pred_check_branch
        %775 = sbr.rel (%p773) target = $region72
      $region71: #{tpu_custom_call.1} parent=67 // pred_region
        %s776 = smul.u32 2, %s22
        %p777 = scmp.lt.s32.totalorder %s776, 7
        %s778 = scalar_select %p777, %s776, 7
        %s779 = smul.addr %s778, 8
        %s780 = scalar_lea.vmem %s10, %s779
      $region72: #{tpu_custom_call.1} parent=67 // pred_fallthru
        _
    $region68: #{tpu_custom_call.1} parent=5 // pred_fallthru
      _
  $region6: #{tpu_custom_call.1} parent=0 // loop_footer
    %s20 = sadd.s32 1, %s16
  $region7: #{tpu_custom_call.1} parent=0 // loop_footer_branch
    %15 = sbr.rel target = $region3
  $region8: #{tpu_custom_call.1} parent=0 // loop_exit
    _

</llo_original>
